<compile_context>
chip_gen: v7x
topology: tpu7x:2x2x1
jax: 0.10.0
libtpu: 0.0.40
codegen_flags: <defaults>
</compile_context>

<pallas_src>
import jax
import jax.numpy as jnp
from jax.experimental import pallas as pl
from jax.experimental.pallas import tpu as pltpu

HIDDEN = 1024  # fixed by the module definition (nn.Linear(s_size, 1024))


def _round_up(n, m):
    return ((n + m - 1) // m) * m


def policy_kernel(x_ref, w1_ref, b1_ref, w2_ref, b2_ref, o_ref):
    # fc1 + ReLU  (bf16 MXU inputs, f32 accumulation, f32 epilogue)
    x = x_ref[...]                                            # (TB, S) bf16
    h = jnp.dot(x, w1_ref[...],
                preferred_element_type=jnp.float32)           # (TB, 1024) f32
    h = jnp.maximum(h + b1_ref[...], 0.0)                     # bias + ReLU in f32

    # fc2  (cast hidden back to bf16 for the MXU)
    logits = jnp.dot(h.astype(jnp.bfloat16), w2_ref[...],
                     preferred_element_type=jnp.float32)      # (TB, A_pad) f32
    logits = logits + b2_ref[...]                             # pad lanes get -1e30

    # numerically stable softmax along dim=1; padded lanes contribute exp(-inf)=0
    m = jnp.max(logits, axis=1, keepdims=True)                # (TB, 1)
    e = jnp.exp(logits - m)                                   # EUP
    s = jnp.sum(e, axis=1, keepdims=True)                     # (TB, 1)
    o_ref[...] = e * pl.reciprocal(s, approx=False)           # (TB, A_pad)


def policy_forward(x, w1, b1, w2, b2, *, batch_tile=256):
    """x: (B, s_size) f32; w1: (s_size, 1024); b1: (1024,);
       w2: (1024, a_size); b2: (a_size,). Returns (B, a_size) probabilities (f32)."""
    B, S = x.shape
    A = w2.shape[1]

    # Batch tile: 256 rows (fills v6e/v7x MXU) when the batch is large, else just
    # round the batch up to the 8-row sublane granule and use a single tile.
    TB = batch_tile if B >= batch_tile else _round_up(B, 8)
    B_pad = _round_up(B, TB)
    A_pad = _round_up(A, 128)                                 # lane-dense output

    # bf16 matmul operands; f32 biases. Pad columns of W2 with zeros and give the
    # pad columns a huge negative bias so the softmax ignores them exactly.
    x_p = jnp.zeros((B_pad, S), jnp.bfloat16).at[:B, :].set(x.astype(jnp.bfloat16))
    w1_b = w1.astype(jnp.bfloat16)
    b1_2d = b1.reshape(1, HIDDEN).astype(jnp.float32)
    w2_p = jnp.zeros((HIDDEN, A_pad), jnp.bfloat16).at[:, :A].set(w2.astype(jnp.bfloat16))
    b2_p = jnp.full((1, A_pad), -1e30, jnp.float32).at[:, :A].set(b2.astype(jnp.float32))

    out = pl.pallas_call(
        policy_kernel,
        out_shape=jax.ShapeDtypeStruct((B_pad, A_pad), jnp.float32),
        grid=(B_pad // TB,),
        in_specs=[
            pl.BlockSpec((TB, S), lambda i: (i, 0)),            # x tile per grid step
            pl.BlockSpec((S, HIDDEN), lambda i: (0, 0)),        # W1 resident across steps
            pl.BlockSpec((1, HIDDEN), lambda i: (0, 0)),        # b1 resident
            pl.BlockSpec((HIDDEN, A_pad), lambda i: (0, 0)),    # W2 resident
            pl.BlockSpec((1, A_pad), lambda i: (0, 0)),         # b2 resident
        ],
        out_specs=pl.BlockSpec((TB, A_pad), lambda i: (i, 0)),  # lane-dense output slab
        compiler_params=pltpu.CompilerParams(
            dimension_semantics=("parallel",),                  # megacore split on v7x
        ),
    )(x_p, w1_b, b1_2d, w2_p, b2_p)

    return out[:B, :A]


def init_params(key, s_size, a_size):
    """Deterministic synthetic init (uniform ±1/sqrt(fan_in), like nn.Linear)."""
    k1, k2, k3, k4 = jax.random.split(key, 4)
    bound1 = 1.0 / jnp.sqrt(jnp.float32(s_size))
    bound2 = 1.0 / jnp.sqrt(jnp.float32(HIDDEN))
    w1 = jax.random.uniform(k1, (s_size, HIDDEN), jnp.float32, -bound1, bound1)
    b1 = jax.random.uniform(k2, (HIDDEN,), jnp.float32, -bound1, bound1)
    w2 = jax.random.uniform(k3, (HIDDEN, a_size), jnp.float32, -bound2, bound2)
    b2 = jax.random.uniform(k4, (a_size,), jnp.float32, -bound2, bound2)
    return w1, b1, w2, b2


def reference_forward_mixed(x, w1, b1, w2, b2):
    """Same mixed precision as the kernel (bf16 MXU inputs, f32 accum/epilogue)."""
    xb, w1b, w2b = (t.astype(jnp.bfloat16) for t in (x, w1, w2))
    h = jnp.maximum(jnp.dot(xb, w1b, preferred_element_type=jnp.float32) + b1, 0.0)
    logits = jnp.dot(h.astype(jnp.bfloat16), w2b,
                     preferred_element_type=jnp.float32) + b2
    return jax.nn.softmax(logits, axis=1)


def reference_forward_f32(x, w1, b1, w2, b2):
    h = jnp.maximum(x @ w1 + b1, 0.0)
    return jax.nn.softmax(h @ w2 + b2, axis=1)


if __name__ == "__main__":
    key = jax.random.PRNGKey(0)
    k_x, k_p, k_x2 = jax.random.split(key, 3)

    batch, s_size, a_size = 2, 8, 4
    x = jax.random.normal(k_x, (batch, s_size), jnp.float32)
    w1, b1, w2, b2 = init_params(k_p, s_size, a_size)

    # --- small-batch check (single tile path) ---
    probs = jax.block_until_ready(policy_forward(x, w1, b1, w2, b2))
    ref_mixed = reference_forward_mixed(x, w1, b1, w2, b2)
    ref_f32 = reference_forward_f32(x, w1, b1, w2, b2)

    assert probs.shape == (batch, a_size)
    assert jnp.allclose(probs, ref_mixed, atol=1e-4, rtol=1e-4)
    assert jnp.allclose(probs, ref_f32, atol=2e-2)          # bf16 matmul tolerance
    assert jnp.allclose(jnp.sum(probs, axis=1), 1.0, atol=1e-5)

    # --- batched check (multi-tile grid, weights resident across grid steps) ---
    big_batch = 512
    x_big = jax.random.normal(k_x2, (big_batch, s_size), jnp.float32)
    probs_big = jax.block_until_ready(policy_forward(x_big, w1, b1, w2, b2))
    ref_big = reference_forward_mixed(x_big, w1, b1, w2, b2)

    assert probs_big.shape == (big_batch, a_size)
    assert jnp.allclose(probs_big, ref_big, atol=1e-4, rtol=1e-4)
    assert jnp.allclose(jnp.sum(probs_big, axis=1), 1.0, atol=1e-5)

    # TODO(synk): Policy.act (Categorical sampling + log_prob) is host/rollout-side
    # logic, not part of the nn.Module forward pass, so it is not ported here.
    print("KERNEL_OK")
</pallas_src>

<mosaic_0001>
module attributes {stable_mosaic.version = 11 : i64} {
  func.func @policy_kernel(%arg0: i32, %arg1: memref<8x8xbf16, #tpu.memory_space<vmem>>, %arg2: memref<8x1024xbf16, #tpu.memory_space<vmem>>, %arg3: memref<1x1024xf32, #tpu.memory_space<vmem>>, %arg4: memref<1024x128xbf16, #tpu.memory_space<vmem>>, %arg5: memref<1x128xf32, #tpu.memory_space<vmem>>, %arg6: memref<8x128xf32, #tpu.memory_space<vmem>>) attributes {dimension_semantics = [#tpu.dimension_semantics<parallel>], iteration_bounds = array<i64: 1>, scalar_prefetch = 0 : i64, scratch_operands = 0 : i64, tpu.core_type = #tpu.core_type<tc>, window_params = [{transform_indices = @transform_0, window_bounds = array<i64: 8, 8>}, {pipeline_mode = #tpu.pipeline_mode<synchronous>, transform_indices = @transform_1, window_bounds = array<i64: 8, 1024>}, {pipeline_mode = #tpu.pipeline_mode<synchronous>, transform_indices = @transform_2, window_bounds = array<i64: 1, 1024>}, {pipeline_mode = #tpu.pipeline_mode<synchronous>, transform_indices = @transform_3, window_bounds = array<i64: 1024, 128>}, {pipeline_mode = #tpu.pipeline_mode<synchronous>, transform_indices = @transform_4, window_bounds = array<i64: 1, 128>}, {transform_indices = @transform_5, window_bounds = array<i64: 8, 128>}]} {
    %c0 = arith.constant 0 : index
    %c0_0 = arith.constant 0 : index
    %0 = vector.load %arg1[%c0, %c0_0] : memref<8x8xbf16, #tpu.memory_space<vmem>>, vector<8x8xbf16>
    %c0_1 = arith.constant 0 : index
    %c0_2 = arith.constant 0 : index
    %1 = vector.load %arg2[%c0_1, %c0_2] : memref<8x1024xbf16, #tpu.memory_space<vmem>>, vector<8x1024xbf16>
    %cst = arith.constant dense<0.000000e+00> : vector<8x1024xf32>
    %2 = tpu.matmul %0, %1, %cst {dimension_numbers = #tpu.dot_dimension_numbers<[1], [0], [0], [1], [0, 0, 1, 1], [], []>} : vector<8x8xbf16>, vector<8x1024xbf16>, vector<8x1024xf32> -> vector<8x1024xf32>
    %c0_3 = arith.constant 0 : index
    %c0_4 = arith.constant 0 : index
    %3 = vector.load %arg3[%c0_3, %c0_4] : memref<1x1024xf32, #tpu.memory_space<vmem>>, vector<1x1024xf32>
    %4 = vector.broadcast %3 : vector<1x1024xf32> to vector<8x1024xf32>
    %5 = arith.addf %2, %4 : vector<8x1024xf32>
    %cst_5 = arith.constant 0.000000e+00 : f32
    %6 = vector.broadcast %cst_5 : f32 to vector<8x1024xf32>
    %7 = arith.maximumf %5, %6 : vector<8x1024xf32>
    %8 = arith.truncf %7 : vector<8x1024xf32> to vector<8x1024xbf16>
    %c0_6 = arith.constant 0 : index
    %c0_7 = arith.constant 0 : index
    %9 = vector.load %arg4[%c0_6, %c0_7] : memref<1024x128xbf16, #tpu.memory_space<vmem>>, vector<1024x128xbf16>
    %cst_8 = arith.constant dense<0.000000e+00> : vector<8x128xf32>
    %10 = tpu.matmul %8, %9, %cst_8 {dimension_numbers = #tpu.dot_dimension_numbers<[1], [0], [0], [1], [0, 0, 1, 1], [], []>} : vector<8x1024xbf16>, vector<1024x128xbf16>, vector<8x128xf32> -> vector<8x128xf32>
    %c0_9 = arith.constant 0 : index
    %c0_10 = arith.constant 0 : index
    %11 = vector.load %arg5[%c0_9, %c0_10] : memref<1x128xf32, #tpu.memory_space<vmem>>, vector<1x128xf32>
    %12 = vector.broadcast %11 : vector<1x128xf32> to vector<8x128xf32>
    %13 = arith.addf %10, %12 : vector<8x128xf32>
    %cst_11 = arith.constant dense<0xFF800000> : vector<8xf32>
    %14 = vector.multi_reduction <maximumf>, %13, %cst_11 [1] : vector<8x128xf32> to vector<8xf32>
    %15 = vector.shape_cast %14 : vector<8xf32> to vector<8x1xf32>
    %16 = vector.broadcast %15 : vector<8x1xf32> to vector<8x128xf32>
    %17 = arith.subf %13, %16 : vector<8x128xf32>
    %18 = math.exp %17 : vector<8x128xf32>
    %cst_12 = arith.constant dense<0.000000e+00> : vector<8xf32>
    %19 = vector.multi_reduction <add>, %18, %cst_12 [1] : vector<8x128xf32> to vector<8xf32>
    %20 = vector.shape_cast %19 : vector<8xf32> to vector<8x1xf32>
    %21 = tpu.reciprocal %20 : vector<8x1xf32> -> vector<8x1xf32>
    %22 = vector.broadcast %21 : vector<8x1xf32> to vector<8x128xf32>
    %23 = arith.mulf %18, %22 : vector<8x128xf32>
    %c0_13 = arith.constant 0 : index
    %c0_14 = arith.constant 0 : index
    %24 = vector.load %arg6[%c0_13, %c0_14] : memref<8x128xf32, #tpu.memory_space<vmem>>, vector<8x128xf32>
    tpu.vector_store %arg6[%c0_13, %c0_14], %23 {strides = array<i32>} : memref<8x128xf32, #tpu.memory_space<vmem>>, vector<8x128xf32>,
    return
  }
  func.func @transform_0(%arg0: i32) -> (i32, i32) {
    %c0_i32 = arith.constant 0 : i32
    %c0_i32_0 = arith.constant 0 : i32
    return %arg0, %c0_i32 : i32, i32
  }
  func.func @transform_1(%arg0: i32) -> (i32, i32) {
    %c0_i32 = arith.constant 0 : i32
    %c0_i32_0 = arith.constant 0 : i32
    %c0_i32_1 = arith.constant 0 : i32
    return %c0_i32, %c0_i32_0 : i32, i32
  }
  func.func @transform_2(%arg0: i32) -> (i32, i32) {
    %c0_i32 = arith.constant 0 : i32
    %c0_i32_0 = arith.constant 0 : i32
    %c0_i32_1 = arith.constant 0 : i32
    return %c0_i32, %c0_i32_0 : i32, i32
  }
  func.func @transform_3(%arg0: i32) -> (i32, i32) {
    %c0_i32 = arith.constant 0 : i32
    %c0_i32_0 = arith.constant 0 : i32
    %c0_i32_1 = arith.constant 0 : i32
    return %c0_i32, %c0_i32_0 : i32, i32
  }
  func.func @transform_4(%arg0: i32) -> (i32, i32) {
    %c0_i32 = arith.constant 0 : i32
    %c0_i32_0 = arith.constant 0 : i32
    %c0_i32_1 = arith.constant 0 : i32
    return %c0_i32, %c0_i32_0 : i32, i32
  }
  func.func @transform_5(%arg0: i32) -> (i32, i32) {
    %c0_i32 = arith.constant 0 : i32
    %c0_i32_0 = arith.constant 0 : i32
    return %arg0, %c0_i32 : i32, i32
  }
}

</mosaic_0001>

<llo_original>
// kernel: tpu_custom_call.1
$region0: #{tpu_custom_call.1}
  #allocation0 [shape = 'u32[]', space=smem, size = 0x4, offset = 0x4, fixed_abs, tag = 'smem constant byte address 0x4 - core index']
  #allocation1 [shape = 'u32[144,128]{1,0:T(1,128)}', space=vmem, size = 0x12000, scoped, tag = 'internal scratch']
  %s0 = inlined_call_operand.hbm [shape: bf16[8,8], index: 0, kind: input, shape index: {}]
  %s1 = inlined_call_operand.hbm [shape: bf16[8,1024], index: 1, kind: input, shape index: {}]
  %s2 = inlined_call_operand.hbm [shape: f32[1,1024], index: 2, kind: input, shape index: {}]
  %s3 = inlined_call_operand.hbm [shape: bf16[1024,128], index: 3, kind: input, shape index: {}]
  %s4 = inlined_call_operand.vmem [shape: f32[1,128], index: 4, kind: input, shape index: {}]
  %s5 = inlined_call_operand.hbm [shape: f32[8,128], index: 5, kind: output, shape index: {}]
  %s6 = sld [smem:[#allocation0]]
  $region46: #{tpu_custom_call.1} parent=0
    _
  %s8 = ssub.s32 1, %s6
  %s9 = scalar_select 0, %s8, %s6
  $region1: #{tpu_custom_call.1} parent=0
    #allocation2 [shape = 'u8[2048]{0}', space=vmem, size = 0x800, scoped, tag = 'input window, operand 0, single buffered']
    #allocation3 [shape = 's32[1]{0}', space=sflag, size = 0x4, scoped, tag = 'scoped memory for tpu_custom_call.1']
    #allocation4 [shape = 's32[1]{0}', space=sflag, size = 0x4, scoped, tag = 'scoped memory for tpu_custom_call.1']
    #allocation5 [shape = 'u8[16384]{0}', space=vmem, size = 0x4000, scoped, tag = 'input window, operand 1, single buffered']
    #allocation6 [shape = 's32[1]{0}', space=sflag, size = 0x4, scoped, tag = 'scoped memory for tpu_custom_call.1']
    #allocation7 [shape = 'u8[4096]{0}', space=vmem, size = 0x1000, scoped, tag = 'input window, operand 2, single buffered']
    #allocation8 [shape = 'u8[262144]{0}', space=vmem, size = 0x40000, scoped, tag = 'input window, operand 3, single buffered']
    #allocation9 [shape = 's32[1]{0}', space=sflag, size = 0x4, scoped, tag = 'scoped memory for tpu_custom_call.1']
    #allocation10 [shape = 'u8[4096]{0}', space=vmem, size = 0x1000, scoped, tag = 'output window, operand 0, single buffered']
    %10 = vsyncpa [#allocation3], 0
    %11 = vsyncpa [#allocation6], 0
    %12 = vsyncpa [#allocation9], 0
    %13 = vsyncpa [#allocation4], 0
    // Predicated region
    $region2: #{tpu_custom_call.1} parent=1 // pred_check
      _
    $region3: #{tpu_custom_call.1} parent=1 // pred_check_branch
      %15 = sbr.rel (0) target = $region5
    $region4: #{tpu_custom_call.1} parent=1 // pred_region
      %s17 = ssub.s32 64, 64
      %18 = vsyncadd [#allocation3], %s17
      %s20 = sshll.u32 [#allocation2], 4
      %s21 = int_to_ptr.vmem [resolvable:$true] %s20
      %23 = dma.hbm_to_vmem [thread:$0]  %s0, 64, %s21, [#allocation3]
    $region5: #{tpu_custom_call.1} parent=1 // pred_fallthru
      _
    // Predicated region
    $region6: #{tpu_custom_call.1} parent=1 // pred_check
      _
    $region7: #{tpu_custom_call.1} parent=1 // pred_check_branch
      %25 = sbr.rel (0) target = $region9
    $region8: #{tpu_custom_call.1} parent=1 // pred_region
      %s27 = ssub.s32 512, 512
      %28 = vsyncadd [#allocation6], %s27
      %s30 = sshll.u32 [#allocation5], 4
      %s31 = int_to_ptr.vmem [resolvable:$true] %s30
      %33 = dma.hbm_to_vmem [thread:$0]  %s1, 512, %s31, [#allocation6]
    $region9: #{tpu_custom_call.1} parent=1 // pred_fallthru
      _
    // Predicated region
    $region10: #{tpu_custom_call.1} parent=1 // pred_check
      _
    $region11: #{tpu_custom_call.1} parent=1 // pred_check_branch
      %35 = sbr.rel (0) target = $region13
    $region12: #{tpu_custom_call.1} parent=1 // pred_region
      %s37 = ssub.s32 128, 128
      %38 = vsyncadd [#allocation6], %s37
      %s40 = sshll.u32 [#allocation7], 4
      %s41 = int_to_ptr.vmem [resolvable:$true] %s40
      %43 = dma.hbm_to_vmem [thread:$0]  %s2, 128, %s41, [#allocation6]
    $region13: #{tpu_custom_call.1} parent=1 // pred_fallthru
      _
    // Predicated region
    $region14: #{tpu_custom_call.1} parent=1 // pred_check
      _
    $region15: #{tpu_custom_call.1} parent=1 // pred_check_branch
      %45 = sbr.rel (0) target = $region17
    $region16: #{tpu_custom_call.1} parent=1 // pred_region
      %s47 = ssub.s32 8192, 8192
      %48 = vsyncadd [#allocation9], %s47
      %s49 = sshll.u32 [#allocation8], 4
      %s50 = int_to_ptr.vmem [resolvable:$true] %s49
      %55 = dma.hbm_to_vmem [thread:$0]  %s3, 8192, %s50, [#allocation9], 64, 64, 4
    $region17: #{tpu_custom_call.1} parent=1 // pred_fallthru
      _
    // Predicated region
    $region18: #{tpu_custom_call.1} parent=1 // pred_check
      _
    $region19: #{tpu_custom_call.1} parent=1 // pred_check_branch
      %57 = sbr.rel (0) target = $region21
    $region20: #{tpu_custom_call.1} parent=1 // pred_region
      _
    $region21: #{tpu_custom_call.1} parent=1 // pred_fallthru
      _
    // Predicated region
    $region22: #{tpu_custom_call.1} parent=1 // pred_check
      _
    $region23: #{tpu_custom_call.1} parent=1 // pred_check_branch
      %59 = sbr.rel (0) target = $region25
    $region24: #{tpu_custom_call.1} parent=1 // pred_region
      %60 = dma.done [#allocation3], 64
    $region25: #{tpu_custom_call.1} parent=1 // pred_fallthru
      _
    // Predicated region
    $region26: #{tpu_custom_call.1} parent=1 // pred_check
      _
    $region27: #{tpu_custom_call.1} parent=1 // pred_check_branch
      %62 = sbr.rel (0) target = $region29
    $region28: #{tpu_custom_call.1} parent=1 // pred_region
      %63 = dma.done [#allocation6], 512
    $region29: #{tpu_custom_call.1} parent=1 // pred_fallthru
      _
    // Predicated region
    $region30: #{tpu_custom_call.1} parent=1 // pred_check
      _
    $region31: #{tpu_custom_call.1} parent=1 // pred_check_branch
      %65 = sbr.rel (0) target = $region33
    $region32: #{tpu_custom_call.1} parent=1 // pred_region
      %66 = dma.done [#allocation6], 128
    $region33: #{tpu_custom_call.1} parent=1 // pred_fallthru
      _
    // Predicated region
    $region34: #{tpu_custom_call.1} parent=1 // pred_check
      _
    $region35: #{tpu_custom_call.1} parent=1 // pred_check_branch
      %68 = sbr.rel (0) target = $region37
    $region36: #{tpu_custom_call.1} parent=1 // pred_region
      %69 = dma.done [#allocation9], 8192
    $region37: #{tpu_custom_call.1} parent=1 // pred_fallthru
      _
    %v71 = vld [vmem:[#allocation2] sm:$0xf]
    %v72 = vld [vmem:[#allocation5] sm:$0xff]
    %v73 = vld [vmem:[#allocation5 + $0x8] sm:$0xff]
    %v74 = vld [vmem:[#allocation5 + $0x10] sm:$0xff]
    %v75 = vld [vmem:[#allocation5 + $0x18] sm:$0xff]
    %v76 = vld [vmem:[#allocation7] sm:$0xff]
    %v78 = vlaneseq
    %v79 = vshrl.u32 %v78, 7
    %v80 = vsub.s32 0, %v79
    %v81 = vrot.slane %v76, %v80
    %v82 = vlaneseq
    %v83 = vshrl.u32 %v82, 7
    %v84 = vsub.s32 1, %v83
    %v85 = vrot.slane %v76, %v84
    %v86 = vlaneseq
    %v87 = vshrl.u32 %v86, 7
    %v88 = vsub.s32 2, %v87
    %v89 = vrot.slane %v76, %v88
    %v90 = vlaneseq
    %v91 = vshrl.u32 %v90, 7
    %v92 = vsub.s32 3, %v91
    %v93 = vrot.slane %v76, %v92
    %v94 = vlaneseq
    %v95 = vshrl.u32 %v94, 7
    %v96 = vsub.s32 4, %v95
    %v97 = vrot.slane %v76, %v96
    %v98 = vlaneseq
    %v99 = vshrl.u32 %v98, 7
    %v100 = vsub.s32 5, %v99
    %v101 = vrot.slane %v76, %v100
    %v102 = vlaneseq
    %v103 = vshrl.u32 %v102, 7
    %v104 = vsub.s32 6, %v103
    %v105 = vrot.slane %v76, %v104
    %v106 = vlaneseq
    %v107 = vshrl.u32 %v106, 7
    %v108 = vsub.s32 7, %v107
    %v109 = vrot.slane %v76, %v108
    %v122 = vunpack.c.l.b16 %v72
    %v123 = vunpack.c.h.b16 %v72
    %v124 = vunpack.c.l.b16 %v73
    %v125 = vunpack.c.h.b16 %v73
    %v126 = vunpack.c.l.b16 %v74
    %v127 = vunpack.c.h.b16 %v74
    %v128 = vunpack.c.l.b16 %v75
    %v129 = vunpack.c.h.b16 %v75
    %v130 = vpack.c.b16 %v122, %v122
    %v131 = vpack.c.b16 %v123, %v123
    %v132 = vpack.c.b16 %v124, %v124
    %v133 = vpack.c.b16 %v125, %v125
    %v134 = vpack.c.b16 %v126, %v126
    %v135 = vpack.c.b16 %v127, %v127
    %v136 = vpack.c.b16 %v128, %v128
    %v137 = vpack.c.b16 %v129, %v129
    %vm138 = vcmask 64512
    %v140 = vsel %vm138, %v71, 0
    %vm142 = vcmask 1043456
    %v144 = vsel %vm142, %v130, 0
    %v147 = vsel %vm142, %v131, 0
    %v150 = vsel %vm142, %v132, 0
    %v153 = vsel %vm142, %v133, 0
    %v156 = vsel %vm142, %v134, 0
    %v159 = vsel %vm142, %v135, 0
    %v162 = vsel %vm142, %v136, 0
    %v165 = vsel %vm142, %v137, 0
    %167 = vmatprep.subr.bf16.mxu0 %v147
    %168 = vmatpush1.bf16.msra.mxu0 %v144
    %169 = vmatprep.subr.bf16.mxu0 0
    %170 = vmatpush1.bf16.msra.mxu0 0
    %171 = vmatprep.subr.bf16.mxu0 0
    %172 = vmatpush1.bf16.msra.mxu0 0
    %173 = vmatprep.subr.bf16.mxu0 0
    %174 = vmatpush1.bf16.msra.mxu0 0
    %175 = vmatprep.subr.bf16.mxu0 0
    %176 = vmatpush1.bf16.msra.mxu0 0
    %177 = vmatprep.subr.bf16.mxu0 0
    %178 = vmatpush1.bf16.msra.mxu0 0
    %179 = vmatprep.subr.bf16.mxu0 0
    %180 = vmatpush1.bf16.msra.mxu0 0
    %181 = vmatprep.subr.bf16.mxu0 0
    %182 = vmatpush1.bf16.msra.mxu0 0
    %183 = vmatprep.subr.bf16.mxu0 0
    %184 = vmatpush1.bf16.msra.mxu0 0
    %185 = vmatprep.subr.bf16.mxu0 0
    %186 = vmatpush1.bf16.msra.mxu0 0
    %187 = vmatprep.subr.bf16.mxu0 0
    %188 = vmatpush1.bf16.msra.mxu0 0
    %189 = vmatprep.subr.bf16.mxu0 0
    %190 = vmatpush1.bf16.msra.mxu0 0
    %191 = vmatprep.subr.bf16.mxu0 0
    %192 = vmatpush1.bf16.msra.mxu0 0
    %193 = vmatprep.subr.bf16.mxu0 0
    %194 = vmatpush1.bf16.msra.mxu0 0
    %195 = vmatprep.subr.bf16.mxu0 0
    %196 = vmatpush1.bf16.msra.mxu0 0
    %197 = vmatprep.subr.bf16.mxu0 0
    %198 = vmatpush1.bf16.msra.mxu0 0
    %199 = vmatprep.mubr.bf16.mxu0 0
    %200 = vmatmul.mubr.bf16.gmra.mrb[0].mxu0 %v140
    %v201 = vpop.f32.mrb[0].mxu0
    %v202 = vadd.f32 %v81, %v201
    %v203 = vpop.f32.mrb[0].mxu0
    %v204 = vadd.f32 %v85, %v203
    %v205 = vpop.f32.mrb[0].mxu0
    %v206 = vpop.f32.mrb[0].mxu0
    %207 = vdwg.mxu0
    %208 = vmatprep.subr.bf16.mxu0 %v153
    %209 = vmatpush1.bf16.msra.mxu0 %v150
    %210 = vmatprep.subr.bf16.mxu0 0
    %211 = vmatpush1.bf16.msra.mxu0 0
    %212 = vmatprep.subr.bf16.mxu0 0
    %213 = vmatpush1.bf16.msra.mxu0 0
    %214 = vmatprep.subr.bf16.mxu0 0
    %215 = vmatpush1.bf16.msra.mxu0 0
    %216 = vmatprep.subr.bf16.mxu0 0
    %217 = vmatpush1.bf16.msra.mxu0 0
    %218 = vmatprep.subr.bf16.mxu0 0
    %219 = vmatpush1.bf16.msra.mxu0 0
    %220 = vmatprep.subr.bf16.mxu0 0
    %221 = vmatpush1.bf16.msra.mxu0 0
    %222 = vmatprep.subr.bf16.mxu0 0
    %223 = vmatpush1.bf16.msra.mxu0 0
    %224 = vmatprep.subr.bf16.mxu0 0
    %225 = vmatpush1.bf16.msra.mxu0 0
    %226 = vmatprep.subr.bf16.mxu0 0
    %227 = vmatpush1.bf16.msra.mxu0 0
    %228 = vmatprep.subr.bf16.mxu0 0
    %229 = vmatpush1.bf16.msra.mxu0 0
    %230 = vmatprep.subr.bf16.mxu0 0
    %231 = vmatpush1.bf16.msra.mxu0 0
    %232 = vmatprep.subr.bf16.mxu0 0
    %233 = vmatpush1.bf16.msra.mxu0 0
    %234 = vmatprep.subr.bf16.mxu0 0
    %235 = vmatpush1.bf16.msra.mxu0 0
    %236 = vmatprep.subr.bf16.mxu0 0
    %237 = vmatpush1.bf16.msra.mxu0 0
    %238 = vmatprep.subr.bf16.mxu0 0
    %239 = vmatpush1.bf16.msra.mxu0 0
    %240 = vmatprep.mubr.bf16.mxu0 0
    %241 = vmatmul.mubr.bf16.gmra.mrb[0].mxu0 %v140
    %v242 = vpop.f32.mrb[0].mxu0
    %v243 = vadd.f32 %v89, %v242
    %v244 = vpop.f32.mrb[0].mxu0
    %v245 = vadd.f32 %v93, %v244
    %v246 = vpop.f32.mrb[0].mxu0
    %v247 = vpop.f32.mrb[0].mxu0
    %248 = vdwg.mxu0
    %249 = vmatprep.subr.bf16.mxu0 %v159
    %250 = vmatpush1.bf16.msra.mxu0 %v156
    %251 = vmatprep.subr.bf16.mxu0 0
    %252 = vmatpush1.bf16.msra.mxu0 0
    %253 = vmatprep.subr.bf16.mxu0 0
    %254 = vmatpush1.bf16.msra.mxu0 0
    %255 = vmatprep.subr.bf16.mxu0 0
    %256 = vmatpush1.bf16.msra.mxu0 0
    %257 = vmatprep.subr.bf16.mxu0 0
    %258 = vmatpush1.bf16.msra.mxu0 0
    %259 = vmatprep.subr.bf16.mxu0 0
    %260 = vmatpush1.bf16.msra.mxu0 0
    %261 = vmatprep.subr.bf16.mxu0 0
    %262 = vmatpush1.bf16.msra.mxu0 0
    %263 = vmatprep.subr.bf16.mxu0 0
    %264 = vmatpush1.bf16.msra.mxu0 0
    %265 = vmatprep.subr.bf16.mxu0 0
    %266 = vmatpush1.bf16.msra.mxu0 0
    %267 = vmatprep.subr.bf16.mxu0 0
    %268 = vmatpush1.bf16.msra.mxu0 0
    %269 = vmatprep.subr.bf16.mxu0 0
    %270 = vmatpush1.bf16.msra.mxu0 0
    %271 = vmatprep.subr.bf16.mxu0 0
    %272 = vmatpush1.bf16.msra.mxu0 0
    %273 = vmatprep.subr.bf16.mxu0 0
    %274 = vmatpush1.bf16.msra.mxu0 0
    %275 = vmatprep.subr.bf16.mxu0 0
    %276 = vmatpush1.bf16.msra.mxu0 0
    %277 = vmatprep.subr.bf16.mxu0 0
    %278 = vmatpush1.bf16.msra.mxu0 0
    %279 = vmatprep.subr.bf16.mxu0 0
    %280 = vmatpush1.bf16.msra.mxu0 0
    %281 = vmatprep.mubr.bf16.mxu0 0
    %282 = vmatmul.mubr.bf16.gmra.mrb[0].mxu0 %v140
    %v283 = vpop.f32.mrb[0].mxu0
    %v284 = vadd.f32 %v97, %v283
    %v285 = vpop.f32.mrb[0].mxu0
    %v286 = vadd.f32 %v101, %v285
    %v287 = vpop.f32.mrb[0].mxu0
    %v288 = vpop.f32.mrb[0].mxu0
    %289 = vdwg.mxu0
    %290 = vmatprep.subr.bf16.mxu0 %v165
    %291 = vmatpush1.bf16.msra.mxu0 %v162
    %292 = vmatprep.subr.bf16.mxu0 0
    %293 = vmatpush1.bf16.msra.mxu0 0
    %294 = vmatprep.subr.bf16.mxu0 0
    %295 = vmatpush1.bf16.msra.mxu0 0
    %296 = vmatprep.subr.bf16.mxu0 0
    %297 = vmatpush1.bf16.msra.mxu0 0
    %298 = vmatprep.subr.bf16.mxu0 0
    %299 = vmatpush1.bf16.msra.mxu0 0
    %300 = vmatprep.subr.bf16.mxu0 0
    %301 = vmatpush1.bf16.msra.mxu0 0
    %302 = vmatprep.subr.bf16.mxu0 0
    %303 = vmatpush1.bf16.msra.mxu0 0
    %304 = vmatprep.subr.bf16.mxu0 0
    %305 = vmatpush1.bf16.msra.mxu0 0
    %306 = vmatprep.subr.bf16.mxu0 0
    %307 = vmatpush1.bf16.msra.mxu0 0
    %308 = vmatprep.subr.bf16.mxu0 0
    %309 = vmatpush1.bf16.msra.mxu0 0
    %310 = vmatprep.subr.bf16.mxu0 0
    %311 = vmatpush1.bf16.msra.mxu0 0
    %312 = vmatprep.subr.bf16.mxu0 0
    %313 = vmatpush1.bf16.msra.mxu0 0
    %314 = vmatprep.subr.bf16.mxu0 0
    %315 = vmatpush1.bf16.msra.mxu0 0
    %316 = vmatprep.subr.bf16.mxu0 0
    %317 = vmatpush1.bf16.msra.mxu0 0
    %318 = vmatprep.subr.bf16.mxu0 0
    %319 = vmatpush1.bf16.msra.mxu0 0
    %320 = vmatprep.subr.bf16.mxu0 0
    %321 = vmatpush1.bf16.msra.mxu0 0
    %322 = vmatprep.mubr.bf16.mxu0 0
    %323 = vmatmul.mubr.bf16.gmra.mrb[0].mxu0 %v140
    %v324 = vpop.f32.mrb[0].mxu0
    %v325 = vadd.f32 %v105, %v324
    %v326 = vpop.f32.mrb[0].mxu0
    %v327 = vadd.f32 %v109, %v326
    %v328 = vpop.f32.mrb[0].mxu0
    %v329 = vpop.f32.mrb[0].mxu0
    %330 = vdwg.mxu0
    %v331 = vmax.f32 %v202, 0.0
    %v332 = vmax.f32 %v204, 0.0
    %v333 = vmax.f32 %v243, 0.0
    %v334 = vmax.f32 %v245, 0.0
    %v335 = vmax.f32 %v284, 0.0
    %v336 = vmax.f32 %v286, 0.0
    %v337 = vmax.f32 %v325, 0.0
    %v338 = vmax.f32 %v327, 0.0
    %v339 = vpack.c.bf16 %v331, %v331
    %v340 = vpack.c.bf16 %v332, %v332
    %v341 = vpack.c.bf16 %v333, %v333
    %v342 = vpack.c.bf16 %v334, %v334
    %v343 = vpack.c.bf16 %v335, %v335
    %v344 = vpack.c.bf16 %v336, %v336
    %v345 = vpack.c.bf16 %v337, %v337
    %v346 = vpack.c.bf16 %v338, %v338
    %v347 = vld [vmem:[#allocation8] sm:$0xf]
    %v348 = vld [vmem:[#allocation8 + $0x4] sm:$0xf]
    %v349 = vld [vmem:[#allocation8 + $0x8] sm:$0xf]
    %v350 = vld [vmem:[#allocation8 + $0xc] sm:$0xf]
    %v351 = vld [vmem:[#allocation8 + $0x10] sm:$0xf]
    %v352 = vld [vmem:[#allocation8 + $0x14] sm:$0xf]
    %v353 = vld [vmem:[#allocation8 + $0x18] sm:$0xf]
    %v354 = vld [vmem:[#allocation8 + $0x1c] sm:$0xf]
    %v355 = vld [vmem:[#allocation8 + $0x20] sm:$0xf]
    %v356 = vld [vmem:[#allocation8 + $0x24] sm:$0xf]
    %v357 = vld [vmem:[#allocation8 + $0x28] sm:$0xf]
    %v358 = vld [vmem:[#allocation8 + $0x2c] sm:$0xf]
    %v359 = vld [vmem:[#allocation8 + $0x30] sm:$0xf]
    %v360 = vld [vmem:[#allocation8 + $0x34] sm:$0xf]
    %v361 = vld [vmem:[#allocation8 + $0x38] sm:$0xf]
    %v362 = vld [vmem:[#allocation8 + $0x3c] sm:$0xf]
    %v363 = vld [vmem:[#allocation8 + $0x40] sm:$0xf]
    %v364 = vld [vmem:[#allocation8 + $0x44] sm:$0xf]
    %v365 = vld [vmem:[#allocation8 + $0x48] sm:$0xf]
    %v366 = vld [vmem:[#allocation8 + $0x4c] sm:$0xf]
    %v367 = vld [vmem:[#allocation8 + $0x50] sm:$0xf]
    %v368 = vld [vmem:[#allocation8 + $0x54] sm:$0xf]
    %v369 = vld [vmem:[#allocation8 + $0x58] sm:$0xf]
    %v370 = vld [vmem:[#allocation8 + $0x5c] sm:$0xf]
    %v371 = vld [vmem:[#allocation8 + $0x60] sm:$0xf]
    %v372 = vld [vmem:[#allocation8 + $0x64] sm:$0xf]
    %v373 = vld [vmem:[#allocation8 + $0x68] sm:$0xf]
    %v374 = vld [vmem:[#allocation8 + $0x6c] sm:$0xf]
    %v375 = vld [vmem:[#allocation8 + $0x70] sm:$0xf]
    %v376 = vld [vmem:[#allocation8 + $0x74] sm:$0xf]
    %v377 = vld [vmem:[#allocation8 + $0x78] sm:$0xf]
    %v378 = vld [vmem:[#allocation8 + $0x7c] sm:$0xf]
    %v379 = vld [vmem:[#allocation8 + $0x80] sm:$0xf]
    %v380 = vld [vmem:[#allocation8 + $0x84] sm:$0xf]
    %v381 = vld [vmem:[#allocation8 + $0x88] sm:$0xf]
    %v382 = vld [vmem:[#allocation8 + $0x8c] sm:$0xf]
    %v383 = vld [vmem:[#allocation8 + $0x90] sm:$0xf]
    %v384 = vld [vmem:[#allocation8 + $0x94] sm:$0xf]
    %v385 = vld [vmem:[#allocation8 + $0x98] sm:$0xf]
    %v386 = vld [vmem:[#allocation8 + $0x9c] sm:$0xf]
    %v387 = vld [vmem:[#allocation8 + $0xa0] sm:$0xf]
    %v388 = vld [vmem:[#allocation8 + $0xa4] sm:$0xf]
    %v389 = vld [vmem:[#allocation8 + $0xa8] sm:$0xf]
    %v390 = vld [vmem:[#allocation8 + $0xac] sm:$0xf]
    %v391 = vld [vmem:[#allocation8 + $0xb0] sm:$0xf]
    %v392 = vld [vmem:[#allocation8 + $0xb4] sm:$0xf]
    %v393 = vld [vmem:[#allocation8 + $0xb8] sm:$0xf]
    %v394 = vld [vmem:[#allocation8 + $0xbc] sm:$0xf]
    %v395 = vld [vmem:[#allocation8 + $0xc0] sm:$0xf]
    %v396 = vld [vmem:[#allocation8 + $0xc4] sm:$0xf]
    %v397 = vld [vmem:[#allocation8 + $0xc8] sm:$0xf]
    %v398 = vld [vmem:[#allocation8 + $0xcc] sm:$0xf]
    %v399 = vld [vmem:[#allocation8 + $0xd0] sm:$0xf]
    %v400 = vld [vmem:[#allocation8 + $0xd4] sm:$0xf]
    %v401 = vld [vmem:[#allocation8 + $0xd8] sm:$0xf]
    %v402 = vld [vmem:[#allocation8 + $0xdc] sm:$0xf]
    %v403 = vld [vmem:[#allocation8 + $0xe0] sm:$0xf]
    %v404 = vld [vmem:[#allocation8 + $0xe4] sm:$0xf]
    %v405 = vld [vmem:[#allocation8 + $0xe8] sm:$0xf]
    %v406 = vld [vmem:[#allocation8 + $0xec] sm:$0xf]
    %v407 = vld [vmem:[#allocation8 + $0xf0] sm:$0xf]
    %v408 = vld [vmem:[#allocation8 + $0xf4] sm:$0xf]
    %v409 = vld [vmem:[#allocation8 + $0xf8] sm:$0xf]
    %v410 = vld [vmem:[#allocation8 + $0xfc] sm:$0xf]
    %v411 = vld [vmem:[#allocation8 + $0x100] sm:$0xf]
    %v412 = vld [vmem:[#allocation8 + $0x104] sm:$0xf]
    %v413 = vld [vmem:[#allocation8 + $0x108] sm:$0xf]
    %v414 = vld [vmem:[#allocation8 + $0x10c] sm:$0xf]
    %v415 = vld [vmem:[#allocation8 + $0x110] sm:$0xf]
    %v416 = vld [vmem:[#allocation8 + $0x114] sm:$0xf]
    %v417 = vld [vmem:[#allocation8 + $0x118] sm:$0xf]
    %v418 = vld [vmem:[#allocation8 + $0x11c] sm:$0xf]
    %v419 = vld [vmem:[#allocation8 + $0x120] sm:$0xf]
    %v420 = vld [vmem:[#allocation8 + $0x124] sm:$0xf]
    %v421 = vld [vmem:[#allocation8 + $0x128] sm:$0xf]
    %v422 = vld [vmem:[#allocation8 + $0x12c] sm:$0xf]
    %v423 = vld [vmem:[#allocation8 + $0x130] sm:$0xf]
    %v424 = vld [vmem:[#allocation8 + $0x134] sm:$0xf]
    %v425 = vld [vmem:[#allocation8 + $0x138] sm:$0xf]
    %v426 = vld [vmem:[#allocation8 + $0x13c] sm:$0xf]
    %v427 = vld [vmem:[#allocation8 + $0x140] sm:$0xf]
    %v428 = vld [vmem:[#allocation8 + $0x144] sm:$0xf]
    %v429 = vld [vmem:[#allocation8 + $0x148] sm:$0xf]
    %v430 = vld [vmem:[#allocation8 + $0x14c] sm:$0xf]
    %v431 = vld [vmem:[#allocation8 + $0x150] sm:$0xf]
    %v432 = vld [vmem:[#allocation8 + $0x154] sm:$0xf]
    %v433 = vld [vmem:[#allocation8 + $0x158] sm:$0xf]
    %v434 = vld [vmem:[#allocation8 + $0x15c] sm:$0xf]
    %v435 = vld [vmem:[#allocation8 + $0x160] sm:$0xf]
    %v436 = vld [vmem:[#allocation8 + $0x164] sm:$0xf]
    %v437 = vld [vmem:[#allocation8 + $0x168] sm:$0xf]
    %v438 = vld [vmem:[#allocation8 + $0x16c] sm:$0xf]
    %v439 = vld [vmem:[#allocation8 + $0x170] sm:$0xf]
    %v440 = vld [vmem:[#allocation8 + $0x174] sm:$0xf]
    %v441 = vld [vmem:[#allocation8 + $0x178] sm:$0xf]
    %v442 = vld [vmem:[#allocation8 + $0x17c] sm:$0xf]
    %v443 = vld [vmem:[#allocation8 + $0x180] sm:$0xf]
    %v444 = vld [vmem:[#allocation8 + $0x184] sm:$0xf]
    %v445 = vld [vmem:[#allocation8 + $0x188] sm:$0xf]
    %v446 = vld [vmem:[#allocation8 + $0x18c] sm:$0xf]
    %v447 = vld [vmem:[#allocation8 + $0x190] sm:$0xf]
    %v448 = vld [vmem:[#allocation8 + $0x194] sm:$0xf]
    %v449 = vld [vmem:[#allocation8 + $0x198] sm:$0xf]
    %v450 = vld [vmem:[#allocation8 + $0x19c] sm:$0xf]
    %v451 = vld [vmem:[#allocation8 + $0x1a0] sm:$0xf]
    %v452 = vld [vmem:[#allocation8 + $0x1a4] sm:$0xf]
    %v453 = vld [vmem:[#allocation8 + $0x1a8] sm:$0xf]
    %v454 = vld [vmem:[#allocation8 + $0x1ac] sm:$0xf]
    %v455 = vld [vmem:[#allocation8 + $0x1b0] sm:$0xf]
    %v456 = vld [vmem:[#allocation8 + $0x1b4] sm:$0xf]
    %v457 = vld [vmem:[#allocation8 + $0x1b8] sm:$0xf]
    %v458 = vld [vmem:[#allocation8 + $0x1bc] sm:$0xf]
    %v459 = vld [vmem:[#allocation8 + $0x1c0] sm:$0xf]
    %v460 = vld [vmem:[#allocation8 + $0x1c4] sm:$0xf]
    %v461 = vld [vmem:[#allocation8 + $0x1c8] sm:$0xf]
    %v462 = vld [vmem:[#allocation8 + $0x1cc] sm:$0xf]
    %v463 = vld [vmem:[#allocation8 + $0x1d0] sm:$0xf]
    %v464 = vld [vmem:[#allocation8 + $0x1d4] sm:$0xf]
    %v465 = vld [vmem:[#allocation8 + $0x1d8] sm:$0xf]
    %v466 = vld [vmem:[#allocation8 + $0x1dc] sm:$0xf]
    %v467 = vld [vmem:[#allocation8 + $0x1e0] sm:$0xf]
    %v468 = vld [vmem:[#allocation8 + $0x1e4] sm:$0xf]
    %v469 = vld [vmem:[#allocation8 + $0x1e8] sm:$0xf]
    %v470 = vld [vmem:[#allocation8 + $0x1ec] sm:$0xf]
    %v471 = vld [vmem:[#allocation8 + $0x1f0] sm:$0xf]
    %v472 = vld [vmem:[#allocation8 + $0x1f4] sm:$0xf]
    %v473 = vld [vmem:[#allocation8 + $0x1f8] sm:$0xf]
    %v474 = vld [vmem:[#allocation8 + $0x1fc] sm:$0xf]
    %v475 = vld [vmem:[%s4] sm:$0x1]
    %v477 = vlaneseq
    %v478 = vshrl.u32 %v477, 7
    %v479 = vsub.s32 0, %v478
    %v480 = vrot.slane %v475, %v479
    %v610 = vunpack.c.l.b16 %v347
    %v611 = vunpack.c.l.b16 %v348
    %v612 = vunpack.c.l.b16 %v349
    %v613 = vunpack.c.l.b16 %v350
    %v614 = vunpack.c.l.b16 %v351
    %v615 = vunpack.c.l.b16 %v352
    %v616 = vunpack.c.l.b16 %v353
    %v617 = vunpack.c.l.b16 %v354
    %v618 = vunpack.c.l.b16 %v355
    %v619 = vunpack.c.l.b16 %v356
    %v620 = vunpack.c.l.b16 %v357
    %v621 = vunpack.c.l.b16 %v358
    %v622 = vunpack.c.l.b16 %v359
    %v623 = vunpack.c.l.b16 %v360
    %v624 = vunpack.c.l.b16 %v361
    %v625 = vunpack.c.l.b16 %v362
    %v626 = vunpack.c.l.b16 %v363
    %v627 = vunpack.c.l.b16 %v364
    %v628 = vunpack.c.l.b16 %v365
    %v629 = vunpack.c.l.b16 %v366
    %v630 = vunpack.c.l.b16 %v367
    %v631 = vunpack.c.l.b16 %v368
    %v632 = vunpack.c.l.b16 %v369
    %v633 = vunpack.c.l.b16 %v370
    %v634 = vunpack.c.l.b16 %v371
    %v635 = vunpack.c.l.b16 %v372
    %v636 = vunpack.c.l.b16 %v373
    %v637 = vunpack.c.l.b16 %v374
    %v638 = vunpack.c.l.b16 %v375
    %v639 = vunpack.c.l.b16 %v376
    %v640 = vunpack.c.l.b16 %v377
    %v641 = vunpack.c.l.b16 %v378
    %v642 = vunpack.c.l.b16 %v379
    %v643 = vunpack.c.l.b16 %v380
    %v644 = vunpack.c.l.b16 %v381
    %v645 = vunpack.c.l.b16 %v382
    %v646 = vunpack.c.l.b16 %v383
    %v647 = vunpack.c.l.b16 %v384
    %v648 = vunpack.c.l.b16 %v385
    %v649 = vunpack.c.l.b16 %v386
    %v650 = vunpack.c.l.b16 %v387
    %v651 = vunpack.c.l.b16 %v388
    %v652 = vunpack.c.l.b16 %v389
    %v653 = vunpack.c.l.b16 %v390
    %v654 = vunpack.c.l.b16 %v391
    %v655 = vunpack.c.l.b16 %v392
    %v656 = vunpack.c.l.b16 %v393
    %v657 = vunpack.c.l.b16 %v394
    %v658 = vunpack.c.l.b16 %v395
    %v659 = vunpack.c.l.b16 %v396
    %v660 = vunpack.c.l.b16 %v397
    %v661 = vunpack.c.l.b16 %v398
    %v662 = vunpack.c.l.b16 %v399
    %v663 = vunpack.c.l.b16 %v400
    %v664 = vunpack.c.l.b16 %v401
    %v665 = vunpack.c.l.b16 %v402
    %v666 = vunpack.c.l.b16 %v403
    %v667 = vunpack.c.l.b16 %v404
    %v668 = vunpack.c.l.b16 %v405
    %v669 = vunpack.c.l.b16 %v406
    %v670 = vunpack.c.l.b16 %v407
    %v671 = vunpack.c.l.b16 %v408
    %v672 = vunpack.c.l.b16 %v409
    %v673 = vunpack.c.l.b16 %v410
    %v674 = vunpack.c.l.b16 %v411
    %v675 = vunpack.c.l.b16 %v412
    %v676 = vunpack.c.l.b16 %v413
    %v677 = vunpack.c.l.b16 %v414
    %v678 = vunpack.c.l.b16 %v415
    %v679 = vunpack.c.l.b16 %v416
    %v680 = vunpack.c.l.b16 %v417
    %v681 = vunpack.c.l.b16 %v418
    %v682 = vunpack.c.l.b16 %v419
    %v683 = vunpack.c.l.b16 %v420
    %v684 = vunpack.c.l.b16 %v421
    %v685 = vunpack.c.l.b16 %v422
    %v686 = vunpack.c.l.b16 %v423
    %v687 = vunpack.c.l.b16 %v424
    %v688 = vunpack.c.l.b16 %v425
    %v689 = vunpack.c.l.b16 %v426
    %v690 = vunpack.c.l.b16 %v427
    %v691 = vunpack.c.l.b16 %v428
    %v692 = vunpack.c.l.b16 %v429
    %v693 = vunpack.c.l.b16 %v430
    %v694 = vunpack.c.l.b16 %v431
    %v695 = vunpack.c.l.b16 %v432
    %v696 = vunpack.c.l.b16 %v433
    %v697 = vunpack.c.l.b16 %v434
    %v698 = vunpack.c.l.b16 %v435
    %v699 = vunpack.c.l.b16 %v436
    %v700 = vunpack.c.l.b16 %v437
    %v701 = vunpack.c.l.b16 %v438
    %v702 = vunpack.c.l.b16 %v439
    %v703 = vunpack.c.l.b16 %v440
    %v704 = vunpack.c.l.b16 %v441
    %v705 = vunpack.c.l.b16 %v442
    %v706 = vunpack.c.l.b16 %v443
    %v707 = vunpack.c.l.b16 %v444
    %v708 = vunpack.c.l.b16 %v445
    %v709 = vunpack.c.l.b16 %v446
    %v710 = vunpack.c.l.b16 %v447
    %v711 = vunpack.c.l.b16 %v448
    %v712 = vunpack.c.l.b16 %v449
    %v713 = vunpack.c.l.b16 %v450
    %v714 = vunpack.c.l.b16 %v451
    %v715 = vunpack.c.l.b16 %v452
    %v716 = vunpack.c.l.b16 %v453
    %v717 = vunpack.c.l.b16 %v454
    %v718 = vunpack.c.l.b16 %v455
    %v719 = vunpack.c.l.b16 %v456
    %v720 = vunpack.c.l.b16 %v457
    %v721 = vunpack.c.l.b16 %v458
    %v722 = vunpack.c.l.b16 %v459
    %v723 = vunpack.c.l.b16 %v460
    %v724 = vunpack.c.l.b16 %v461
    %v725 = vunpack.c.l.b16 %v462
    %v726 = vunpack.c.l.b16 %v463
    %v727 = vunpack.c.l.b16 %v464
    %v728 = vunpack.c.l.b16 %v465
    %v729 = vunpack.c.l.b16 %v466
    %v730 = vunpack.c.l.b16 %v467
    %v731 = vunpack.c.l.b16 %v468
    %v732 = vunpack.c.l.b16 %v469
    %v733 = vunpack.c.l.b16 %v470
    %v734 = vunpack.c.l.b16 %v471
    %v735 = vunpack.c.l.b16 %v472
    %v736 = vunpack.c.l.b16 %v473
    %v737 = vunpack.c.l.b16 %v474
    %v738 = vpack.c.b16 %v611, %v610
    %v739 = vpack.c.b16 %v613, %v612
    %v740 = vpack.c.b16 %v615, %v614
    %v741 = vpack.c.b16 %v617, %v616
    %v742 = vpack.c.b16 %v619, %v618
    %v743 = vpack.c.b16 %v621, %v620
    %v744 = vpack.c.b16 %v623, %v622
    %v745 = vpack.c.b16 %v625, %v624
    %v746 = vpack.c.b16 %v627, %v626
    %v747 = vpack.c.b16 %v629, %v628
    %v748 = vpack.c.b16 %v631, %v630
    %v749 = vpack.c.b16 %v633, %v632
    %v750 = vpack.c.b16 %v635, %v634
    %v751 = vpack.c.b16 %v637, %v636
    %v752 = vpack.c.b16 %v639, %v638
    %v753 = vpack.c.b16 %v641, %v640
    %v754 = vpack.c.b16 %v643, %v642
    %v755 = vpack.c.b16 %v645, %v644
    %v756 = vpack.c.b16 %v647, %v646
    %v757 = vpack.c.b16 %v649, %v648
    %v758 = vpack.c.b16 %v651, %v650
    %v759 = vpack.c.b16 %v653, %v652
    %v760 = vpack.c.b16 %v655, %v654
    %v761 = vpack.c.b16 %v657, %v656
    %v762 = vpack.c.b16 %v659, %v658
    %v763 = vpack.c.b16 %v661, %v660
    %v764 = vpack.c.b16 %v663, %v662
    %v765 = vpack.c.b16 %v665, %v664
    %v766 = vpack.c.b16 %v667, %v666
    %v767 = vpack.c.b16 %v669, %v668
    %v768 = vpack.c.b16 %v671, %v670
    %v769 = vpack.c.b16 %v673, %v672
    %v770 = vpack.c.b16 %v675, %v674
    %v771 = vpack.c.b16 %v677, %v676
    %v772 = vpack.c.b16 %v679, %v678
    %v773 = vpack.c.b16 %v681, %v680
    %v774 = vpack.c.b16 %v683, %v682
    %v775 = vpack.c.b16 %v685, %v684
    %v776 = vpack.c.b16 %v687, %v686
    %v777 = vpack.c.b16 %v689, %v688
    %v778 = vpack.c.b16 %v691, %v690
    %v779 = vpack.c.b16 %v693, %v692
    %v780 = vpack.c.b16 %v695, %v694
    %v781 = vpack.c.b16 %v697, %v696
    %v782 = vpack.c.b16 %v699, %v698
    %v783 = vpack.c.b16 %v701, %v700
    %v784 = vpack.c.b16 %v703, %v702
    %v785 = vpack.c.b16 %v705, %v704
    %v786 = vpack.c.b16 %v707, %v706
    %v787 = vpack.c.b16 %v709, %v708
    %v788 = vpack.c.b16 %v711, %v710
    %v789 = vpack.c.b16 %v713, %v712
    %v790 = vpack.c.b16 %v715, %v714
    %v791 = vpack.c.b16 %v717, %v716
    %v792 = vpack.c.b16 %v719, %v718
    %v793 = vpack.c.b16 %v721, %v720
    %v794 = vpack.c.b16 %v723, %v722
    %v795 = vpack.c.b16 %v725, %v724
    %v796 = vpack.c.b16 %v727, %v726
    %v797 = vpack.c.b16 %v729, %v728
    %v798 = vpack.c.b16 %v731, %v730
    %v799 = vpack.c.b16 %v733, %v732
    %v800 = vpack.c.b16 %v735, %v734
    %v801 = vpack.c.b16 %v737, %v736
    %866 = vmatprep.subr.bf16.mxu0 0
    %867 = vmatpush1.bf16.msra.mxu0 %v738
    %868 = vmatprep.subr.bf16.mxu0 0
    %869 = vmatpush1.bf16.msra.mxu0 %v739
    %870 = vmatprep.subr.bf16.mxu0 0
    %871 = vmatpush1.bf16.msra.mxu0 %v740
    %872 = vmatprep.subr.bf16.mxu0 0
    %873 = vmatpush1.bf16.msra.mxu0 %v741
    %874 = vmatprep.subr.bf16.mxu0 0
    %875 = vmatpush1.bf16.msra.mxu0 %v742
    %876 = vmatprep.subr.bf16.mxu0 0
    %877 = vmatpush1.bf16.msra.mxu0 %v743
    %878 = vmatprep.subr.bf16.mxu0 0
    %879 = vmatpush1.bf16.msra.mxu0 %v744
    %880 = vmatprep.subr.bf16.mxu0 0
    %881 = vmatpush1.bf16.msra.mxu0 %v745
    %882 = vmatprep.subr.bf16.mxu0 0
    %883 = vmatpush1.bf16.msra.mxu0 %v746
    %884 = vmatprep.subr.bf16.mxu0 0
    %885 = vmatpush1.bf16.msra.mxu0 %v747
    %886 = vmatprep.subr.bf16.mxu0 0
    %887 = vmatpush1.bf16.msra.mxu0 %v748
    %888 = vmatprep.subr.bf16.mxu0 0
    %889 = vmatpush1.bf16.msra.mxu0 %v749
    %890 = vmatprep.subr.bf16.mxu0 0
    %891 = vmatpush1.bf16.msra.mxu0 %v750
    %892 = vmatprep.subr.bf16.mxu0 0
    %893 = vmatpush1.bf16.msra.mxu0 %v751
    %894 = vmatprep.subr.bf16.mxu0 0
    %895 = vmatpush1.bf16.msra.mxu0 %v752
    %896 = vmatprep.subr.bf16.mxu0 0
    %897 = vmatpush1.bf16.msra.mxu0 %v753
    %898 = vmatprep.mubr.bf16.mxu0 %v340
    %899 = vmatmul.mubr.bf16.gmra.mrb[0].mxu0 %v339
    %v900 = vpop.f32.mrb[0].mxu0
    %v901 = vadd.f32 %v480, %v900
    %v902 = vpop.f32.mrb[0].mxu0
    %v903 = vpop.f32.mrb[0].mxu0
    %v904 = vpop.f32.mrb[0].mxu0
    %905 = vdwg.mxu0
    %906 = vmatprep.subr.bf16.mxu0 0
    %907 = vmatpush1.bf16.msra.mxu0 %v754
    %908 = vmatprep.subr.bf16.mxu0 0
    %909 = vmatpush1.bf16.msra.mxu0 %v755
    %910 = vmatprep.subr.bf16.mxu0 0
    %911 = vmatpush1.bf16.msra.mxu0 %v756
    %912 = vmatprep.subr.bf16.mxu0 0
    %913 = vmatpush1.bf16.msra.mxu0 %v757
    %914 = vmatprep.subr.bf16.mxu0 0
    %915 = vmatpush1.bf16.msra.mxu0 %v758
    %916 = vmatprep.subr.bf16.mxu0 0
    %917 = vmatpush1.bf16.msra.mxu0 %v759
    %918 = vmatprep.subr.bf16.mxu0 0
    %919 = vmatpush1.bf16.msra.mxu0 %v760
    %920 = vmatprep.subr.bf16.mxu0 0
    %921 = vmatpush1.bf16.msra.mxu0 %v761
    %922 = vmatprep.subr.bf16.mxu0 0
    %923 = vmatpush1.bf16.msra.mxu0 %v762
    %924 = vmatprep.subr.bf16.mxu0 0
    %925 = vmatpush1.bf16.msra.mxu0 %v763
    %926 = vmatprep.subr.bf16.mxu0 0
    %927 = vmatpush1.bf16.msra.mxu0 %v764
    %928 = vmatprep.subr.bf16.mxu0 0
    %929 = vmatpush1.bf16.msra.mxu0 %v765
    %930 = vmatprep.subr.bf16.mxu0 0
    %931 = vmatpush1.bf16.msra.mxu0 %v766
    %932 = vmatprep.subr.bf16.mxu0 0
    %933 = vmatpush1.bf16.msra.mxu0 %v767
    %934 = vmatprep.subr.bf16.mxu0 0
    %935 = vmatpush1.bf16.msra.mxu0 %v768
    %936 = vmatprep.subr.bf16.mxu0 0
    %937 = vmatpush1.bf16.msra.mxu0 %v769
    %938 = vmatprep.mubr.bf16.mxu0 %v342
    %939 = vmatmul.mubr.bf16.gmra.mrb[0].mxu0 %v341
    %v940 = vpop.f32.mrb[0].mxu0
    %v941 = vadd.f32 %v901, %v940
    %v942 = vpop.f32.mrb[0].mxu0
    %v943 = vpop.f32.mrb[0].mxu0
    %v944 = vpop.f32.mrb[0].mxu0
    %945 = vdwg.mxu0
    %946 = vmatprep.subr.bf16.mxu0 0
    %947 = vmatpush1.bf16.msra.mxu0 %v770
    %948 = vmatprep.subr.bf16.mxu0 0
    %949 = vmatpush1.bf16.msra.mxu0 %v771
    %950 = vmatprep.subr.bf16.mxu0 0
    %951 = vmatpush1.bf16.msra.mxu0 %v772
    %952 = vmatprep.subr.bf16.mxu0 0
    %953 = vmatpush1.bf16.msra.mxu0 %v773
    %954 = vmatprep.subr.bf16.mxu0 0
    %955 = vmatpush1.bf16.msra.mxu0 %v774
    %956 = vmatprep.subr.bf16.mxu0 0
    %957 = vmatpush1.bf16.msra.mxu0 %v775
    %958 = vmatprep.subr.bf16.mxu0 0
    %959 = vmatpush1.bf16.msra.mxu0 %v776
    %960 = vmatprep.subr.bf16.mxu0 0
    %961 = vmatpush1.bf16.msra.mxu0 %v777
    %962 = vmatprep.subr.bf16.mxu0 0
    %963 = vmatpush1.bf16.msra.mxu0 %v778
    %964 = vmatprep.subr.bf16.mxu0 0
    %965 = vmatpush1.bf16.msra.mxu0 %v779
    %966 = vmatprep.subr.bf16.mxu0 0
    %967 = vmatpush1.bf16.msra.mxu0 %v780
    %968 = vmatprep.subr.bf16.mxu0 0
    %969 = vmatpush1.bf16.msra.mxu0 %v781
    %970 = vmatprep.subr.bf16.mxu0 0
    %971 = vmatpush1.bf16.msra.mxu0 %v782
    %972 = vmatprep.subr.bf16.mxu0 0
    %973 = vmatpush1.bf16.msra.mxu0 %v783
    %974 = vmatprep.subr.bf16.mxu0 0
    %975 = vmatpush1.bf16.msra.mxu0 %v784
    %976 = vmatprep.subr.bf16.mxu0 0
    %977 = vmatpush1.bf16.msra.mxu0 %v785
    %978 = vmatprep.mubr.bf16.mxu0 %v344
    %979 = vmatmul.mubr.bf16.gmra.mrb[0].mxu0 %v343
    %v980 = vpop.f32.mrb[0].mxu0
    %v981 = vadd.f32 %v941, %v980
    %v982 = vpop.f32.mrb[0].mxu0
    %v983 = vpop.f32.mrb[0].mxu0
    %v984 = vpop.f32.mrb[0].mxu0
    %985 = vdwg.mxu0
    %986 = vmatprep.subr.bf16.mxu0 0
    %987 = vmatpush1.bf16.msra.mxu0 %v786
    %988 = vmatprep.subr.bf16.mxu0 0
    %989 = vmatpush1.bf16.msra.mxu0 %v787
    %990 = vmatprep.subr.bf16.mxu0 0
    %991 = vmatpush1.bf16.msra.mxu0 %v788
    %992 = vmatprep.subr.bf16.mxu0 0
    %993 = vmatpush1.bf16.msra.mxu0 %v789
    %994 = vmatprep.subr.bf16.mxu0 0
    %995 = vmatpush1.bf16.msra.mxu0 %v790
    %996 = vmatprep.subr.bf16.mxu0 0
    %997 = vmatpush1.bf16.msra.mxu0 %v791
    %998 = vmatprep.subr.bf16.mxu0 0
    %999 = vmatpush1.bf16.msra.mxu0 %v792
    %1000 = vmatprep.subr.bf16.mxu0 0
    %1001 = vmatpush1.bf16.msra.mxu0 %v793
    %1002 = vmatprep.subr.bf16.mxu0 0
    %1003 = vmatpush1.bf16.msra.mxu0 %v794
    %1004 = vmatprep.subr.bf16.mxu0 0
    %1005 = vmatpush1.bf16.msra.mxu0 %v795
    %1006 = vmatprep.subr.bf16.mxu0 0
    %1007 = vmatpush1.bf16.msra.mxu0 %v796
    %1008 = vmatprep.subr.bf16.mxu0 0
    %1009 = vmatpush1.bf16.msra.mxu0 %v797
    %1010 = vmatprep.subr.bf16.mxu0 0
    %1011 = vmatpush1.bf16.msra.mxu0 %v798
    %1012 = vmatprep.subr.bf16.mxu0 0
    %1013 = vmatpush1.bf16.msra.mxu0 %v799
    %1014 = vmatprep.subr.bf16.mxu0 0
    %1015 = vmatpush1.bf16.msra.mxu0 %v800
    %1016 = vmatprep.subr.bf16.mxu0 0
    %1017 = vmatpush1.bf16.msra.mxu0 %v801
    %1018 = vmatprep.mubr.bf16.mxu0 %v346
    %1019 = vmatmul.mubr.bf16.gmra.mrb[0].mxu0 %v345
    %v1020 = vpop.f32.mrb[0].mxu0
    %v1021 = vadd.f32 %v981, %v1020
    %v1022 = vpop.f32.mrb[0].mxu0
    %v1023 = vpop.f32.mrb[0].mxu0
    %v1024 = vpop.f32.mrb[0].mxu0
    %1025 = vdwg.mxu0
    %1026 = vmax.xlane.f32.xlu0 %v1021
    %v1027 = vpop.xlane.xlu0 %1026
    %v1028 = vsub.f32 %v1021, %v1027
    %v1029 = vmul.f32 %v1028, 1.442695
    %v1030 = vpow.pop %v1029
    %1031 = vadd.xlane.f32.xlu0 %v1030
    %v1032 = vpop.xlane.xlu0 %1031
    %v1033 = vrcp.pop %v1032
    %v1034 = vmul.f32 %v1030, %v1033
    %1035 = vst [vmem:[#allocation10] sm:$0xff] %v1034
    // Predicated region
    $region38: #{tpu_custom_call.1} parent=1 // pred_check
      _
    $region39: #{tpu_custom_call.1} parent=1 // pred_check_branch
      %1037 = sbr.rel (0) target = $region41
    $region40: #{tpu_custom_call.1} parent=1 // pred_region
      %s1039 = ssub.s32 128, 128
      %1040 = vsyncadd [#allocation4], %s1039
      %s1042 = sshll.u32 [#allocation10], 4
      %s1043 = int_to_ptr.vmem [resolvable:$true] %s1042
      %1045 = dma.vmem_to_hbm [thread:$0]  %s1043, 128, %s5, [#allocation4]
    $region41: #{tpu_custom_call.1} parent=1 // pred_fallthru
      _
    // Predicated region
    $region42: #{tpu_custom_call.1} parent=1 // pred_check
      _
    $region43: #{tpu_custom_call.1} parent=1 // pred_check_branch
      %1047 = sbr.rel (0) target = $region45
    $region44: #{tpu_custom_call.1} parent=1 // pred_region
      %1048 = dma.done [#allocation4], 128
    $region45: #{tpu_custom_call.1} parent=1 // pred_fallthru
      _
    %1049 = vsyncpa [#allocation3], 1
    %1050 = vsyncpa [#allocation6], 1
    %1051 = vsyncpa [#allocation9], 1
    %1052 = vsyncpa [#allocation4], 1

</llo_original>
